<compile_context>
chip_gen: v6e
topology: v6e:2x2x1
jax: 0.10.0
libtpu: 0.0.40
codegen_flags: <defaults>
</compile_context>

<pallas_src>
import functools

import jax
import jax.numpy as jnp
from jax import lax
from jax.experimental import pallas as pl
from jax.experimental.pallas import tpu as pltpu

HIDDEN = 100        # logical MLP width (nn.Linear(1,100) / (100,100) / (100,1))
HIDDEN_PAD = 128    # padded to the 128-lane vreg / MXU width
# TODO(synk): padded rows 100..127 compute tanh(0); trimming the elementwise
# slabs to 104/112 rows would recover ~20% EUP work but ragged tiles vs the
# 128-wide MXU K make it not worth the complexity here.


def fcnn_kernel(x_ref, w1_ref, b1_ref, w2_ref, b2_ref, w3_ref, b3_ref, o_ref,
                *, chunk, act_dtype, unroll):
    # Shapes (per grid step):
    #   x_ref  : (1, tile)                f32, batch on the lane axis
    #   w1_ref : (HIDDEN_PAD, 1)          f32   (layer-1 weight column)
    #   b1_ref : (HIDDEN_PAD, 1)          f32
    #   w2_ref : (HIDDEN_PAD, HIDDEN_PAD) matmul dtype (= W2^T, zero padded)
    #   b2_ref : (HIDDEN_PAD, 1)          f32
    #   w3_ref : (1, HIDDEN_PAD)          matmul dtype (= W3^T, zero padded)
    #   b3_ref : (1, 1)                   f32
    #   o_ref  : (1, tile)                f32
    w1 = w1_ref[...]
    b1 = b1_ref[...]
    w2 = w2_ref[...]
    b2 = b2_ref[...]
    w3 = w3_ref[...]
    b3 = b3_ref[...]
    mm_dtype = w2.dtype
    n_chunks = x_ref.shape[1] // chunk

    def body(c, carry):
        off = pl.multiple_of(c * chunk, chunk)
        x = x_ref[:, pl.ds(off, chunk)]                        # (1, chunk) f32

        # Layer 1 (in_features = 1): outer product on the VPU, no MXU pass.
        z1 = w1 * x + b1                                       # (128, chunk) f32
        h1 = jnp.tanh(z1.astype(act_dtype)).astype(mm_dtype)

        # Layer 2 (100x100 padded to 128x128): the single real MXU matmul.
        z2 = jnp.dot(w2, h1, preferred_element_type=jnp.float32) + b2
        h2 = jnp.tanh(z2.astype(act_dtype)).astype(mm_dtype)

        # Layer 3 (out_features = 1): (1,128) @ (128,chunk), f32 accumulation.
        out = jnp.dot(w3, h2, preferred_element_type=jnp.float32) + b3
        o_ref[:, pl.ds(off, chunk)] = out.astype(o_ref.dtype)  # lane-dense store
        return carry

    lax.fori_loop(0, n_chunks, body, 0, unroll=unroll)


def _prep_params(params, matmul_dtype):
    """Column layout (out features on sublanes), zero-pad 100 -> 128, and
    pre-cast the MXU weight operands to matmul_dtype (hoists per-step casts
    out of the kernel and halves their resident VMEM)."""
    w1, b1, w2, b2, w3, b3 = params
    f32 = jnp.float32
    w1c = jnp.zeros((HIDDEN_PAD, 1), f32).at[:HIDDEN, :].set(w1.T)
    b1c = jnp.zeros((HIDDEN_PAD, 1), f32).at[:HIDDEN, :].set(b1.T)
    w2t = (jnp.zeros((HIDDEN_PAD, HIDDEN_PAD), f32)
           .at[:HIDDEN, :HIDDEN].set(w2.T).astype(matmul_dtype))
    b2c = jnp.zeros((HIDDEN_PAD, 1), f32).at[:HIDDEN, :].set(b2.T)
    w3r = (jnp.zeros((1, HIDDEN_PAD), f32)
           .at[:, :HIDDEN].set(w3.T).astype(matmul_dtype))
    b3s = jnp.reshape(b3, (1, 1)).astype(f32)
    return w1c, b1c, w2t, b2c, w3r, b3s


def _default_act_dtype():
    # v6e/v7x have bf16 VPU/EUP -> tanh in bf16; v5e (and older) stay f32.
    try:
        kind = jax.devices()[0].device_kind.lower()
    except Exception:
        return jnp.float32
    if ("v6" in kind) or ("v7" in kind) or ("tpu7" in kind):
        return jnp.bfloat16
    return jnp.float32


def fcnn_forward(x, params, *, tm=4096, chunk=256,
                 matmul_dtype=jnp.bfloat16, act_dtype=None):
    """x: (N, 1) float32, arbitrary N. Returns (N, 1) float32."""
    N = x.shape[0]
    if act_dtype is None:
        act_dtype = _default_act_dtype()

    # ---- tile sizing -----------------------------------------------------
    tm = max(128, (tm // 128) * 128)              # lane-dense grid tile
    chunk = max(128, (chunk // 128) * 128)        # lane-dense inner chunk
    tile = min(tm, pl.cdiv(N, 128) * 128)         # single step for small N
    chunk = min(chunk, tile)
    tile = pl.cdiv(tile, chunk) * chunk           # tile % chunk == 0
    steps = pl.cdiv(N, tile)
    if steps > 1 and steps % 2 == 1:
        # Even step count so the "parallel" batch axis splits evenly across
        # v7x's two TensorCores (no-op on single-TC v5e/v6e).
        tile = pl.cdiv(pl.cdiv(N, steps + 1), chunk) * chunk
        steps = pl.cdiv(N, tile)
    n_pad = steps * tile
    n_chunks = tile // chunk
    unroll = n_chunks <= 8          # short trip counts: full LLO visibility

    # Batch on the lane axis, zero-padded; padded lanes compute harmless
    # values (tanh of zeros) and are sliced off below.
    xt = jnp.zeros((1, n_pad), jnp.float32).at[0, :N].set(x[:, 0])

    w1c, b1c, w2t, b2c, w3r, b3s = _prep_params(params, matmul_dtype)

    # Grid-invariant operands: full-array blocks (~50 KB total, VMEM-resident).
    # TODO(synk): pipeline_mode=pl.Buffered(1) would skip double-buffering of
    # these constants; omitted for portability (minor VMEM/descriptor hygiene).
    const = lambda a: pl.BlockSpec(a.shape, lambda i: (0,) * a.ndim)

    cost = pl.CostEstimate(
        flops=2 * n_pad * (HIDDEN_PAD + HIDDEN_PAD * HIDDEN_PAD + HIDDEN_PAD),
        transcendentals=2 * HIDDEN_PAD * n_pad,
        bytes_accessed=8 * n_pad + (HIDDEN_PAD * HIDDEN_PAD + 4 * HIDDEN_PAD) * 4,
    )

    out_t = pl.pallas_call(
        functools.partial(fcnn_kernel, chunk=chunk, act_dtype=act_dtype,
                          unroll=unroll),
        out_shape=jax.ShapeDtypeStruct((1, n_pad), jnp.float32),
        grid_spec=pltpu.PrefetchScalarGridSpec(
            num_scalar_prefetch=0,
            grid=(steps,),
            in_specs=[
                pl.BlockSpec((1, tile), lambda i: (0, i)),   # x: batch on lanes
                const(w1c), const(b1c),
                const(w2t), const(b2c),
                const(w3r), const(b3s),
            ],
            out_specs=pl.BlockSpec((1, tile), lambda i: (0, i)),
        ),
        compiler_params=pltpu.CompilerParams(
            dimension_semantics=("parallel",),   # batch axis; shards TCs on v7x
        ),
        cost_estimate=cost,
    )(xt, w1c, b1c, w2t, b2c, w3r, b3s)

    return out_t[0, :N].reshape(N, 1)


def init_params(key):
    """Deterministic init mimicking PyTorch Linear default (uniform +-1/sqrt(fan_in))."""
    def linear(k, fan_in, fan_out):
        kw, kb = jax.random.split(k)
        bound = 1.0 / jnp.sqrt(fan_in)
        w = jax.random.uniform(kw, (fan_in, fan_out), jnp.float32, -bound, bound)
        b = jax.random.uniform(kb, (1, fan_out), jnp.float32, -bound, bound)
        return w, b

    k1, k2, k3 = jax.random.split(key, 3)
    w1, b1 = linear(k1, 1, HIDDEN)
    w2, b2 = linear(k2, HIDDEN, HIDDEN)
    w3, b3 = linear(k3, HIDDEN, 1)
    return (w1, b1, w2, b2, w3, b3)


def reference_forward(x, params):
    w1, b1, w2, b2, w3, b3 = params
    h1 = jnp.tanh(x @ w1 + b1)
    h2 = jnp.tanh(h1 @ w2 + b2)
    return h2 @ w3 + b3


if __name__ == "__main__":
    key = jax.random.PRNGKey(0)
    kx, kx2, kp = jax.random.split(key, 3)
    params = init_params(kp)

    # Small batch: single 128-lane grid step (padded from N = 16).
    N1 = 16
    x1 = jax.random.uniform(kx, (N1, 1), jnp.float32, -1.0, 1.0)
    ref1 = reference_forward(x1, params)

    # Strict-numerics path (f32 matmul + f32 tanh): tight tolerance.
    out1_f32 = jax.block_until_ready(
        fcnn_forward(x1, params, matmul_dtype=jnp.float32, act_dtype=jnp.float32))
    assert out1_f32.shape == (N1, 1)
    assert jnp.allclose(out1_f32, ref1, atol=1e-4, rtol=1e-4), "f32 path mismatch (N=16)"

    # Default fast path (bf16 MXU operands, f32 accumulation): loose tolerance.
    out1 = jax.block_until_ready(fcnn_forward(x1, params))
    assert out1.shape == (N1, 1)
    assert jnp.allclose(out1, ref1, atol=5e-2, rtol=5e-2), "bf16 path mismatch (N=16)"

    # Larger ragged batch: padded tail + multi-chunk (rolled) inner loop.
    N2 = 3000
    x2 = jax.random.uniform(kx2, (N2, 1), jnp.float32, -1.0, 1.0)
    ref2 = reference_forward(x2, params)

    out2 = jax.block_until_ready(fcnn_forward(x2, params))
    assert out2.shape == (N2, 1)
    assert jnp.allclose(out2, ref2, atol=5e-2, rtol=5e-2), "bf16 path mismatch (N=3000)"

    out2_f32 = jax.block_until_ready(
        fcnn_forward(x2, params, matmul_dtype=jnp.float32, act_dtype=jnp.float32))
    assert jnp.allclose(out2_f32, ref2, atol=1e-4, rtol=1e-4), "f32 path mismatch (N=3000)"

    print("KERNEL_OK")
</pallas_src>

<mosaic_0001>
module attributes {stable_mosaic.version = 11 : i64} {
  func.func @fcnn_kernel(%arg0: i32, %arg1: memref<1x128xf32, #tpu.memory_space<vmem>>, %arg2: memref<128x1xf32, #tpu.memory_space<vmem>>, %arg3: memref<128x1xf32, #tpu.memory_space<vmem>>, %arg4: memref<128x128xf32, #tpu.memory_space<vmem>>, %arg5: memref<128x1xf32, #tpu.memory_space<vmem>>, %arg6: memref<1x128xf32, #tpu.memory_space<vmem>>, %arg7: memref<1x1xf32, #tpu.memory_space<vmem>>, %arg8: memref<1x128xf32, #tpu.memory_space<vmem>>) attributes {dimension_semantics = [#tpu.dimension_semantics<parallel>], iteration_bounds = array<i64: 1>, scalar_prefetch = 0 : i64, scratch_operands = 0 : i64, tpu.core_type = #tpu.core_type<tc>, window_params = [{transform_indices = @transform_0, window_bounds = array<i64: 1, 128>}, {pipeline_mode = #tpu.pipeline_mode<synchronous>, transform_indices = @transform_1, window_bounds = array<i64: 128, 1>}, {pipeline_mode = #tpu.pipeline_mode<synchronous>, transform_indices = @transform_2, window_bounds = array<i64: 128, 1>}, {pipeline_mode = #tpu.pipeline_mode<synchronous>, transform_indices = @transform_3, window_bounds = array<i64: 128, 128>}, {pipeline_mode = #tpu.pipeline_mode<synchronous>, transform_indices = @transform_4, window_bounds = array<i64: 128, 1>}, {pipeline_mode = #tpu.pipeline_mode<synchronous>, transform_indices = @transform_5, window_bounds = array<i64: 1, 128>}, {pipeline_mode = #tpu.pipeline_mode<synchronous>, transform_indices = @transform_6, window_bounds = array<i64: 1, 1>}, {transform_indices = @transform_7, window_bounds = array<i64: 1, 128>}]} {
    %c0 = arith.constant 0 : index
    %c0_0 = arith.constant 0 : index
    %0 = vector.load %arg2[%c0, %c0_0] : memref<128x1xf32, #tpu.memory_space<vmem>>, vector<128x1xf32>
    %c0_1 = arith.constant 0 : index
    %c0_2 = arith.constant 0 : index
    %1 = vector.load %arg3[%c0_1, %c0_2] : memref<128x1xf32, #tpu.memory_space<vmem>>, vector<128x1xf32>
    %c0_3 = arith.constant 0 : index
    %c0_4 = arith.constant 0 : index
    %2 = vector.load %arg4[%c0_3, %c0_4] : memref<128x128xf32, #tpu.memory_space<vmem>>, vector<128x128xf32>
    %c0_5 = arith.constant 0 : index
    %c0_6 = arith.constant 0 : index
    %3 = vector.load %arg5[%c0_5, %c0_6] : memref<128x1xf32, #tpu.memory_space<vmem>>, vector<128x1xf32>
    %c0_7 = arith.constant 0 : index
    %c0_8 = arith.constant 0 : index
    %4 = vector.load %arg6[%c0_7, %c0_8] : memref<1x128xf32, #tpu.memory_space<vmem>>, vector<1x128xf32>
    %c0_9 = arith.constant 0 : index
    %c0_10 = arith.constant 0 : index
    %5 = vector.load %arg7[%c0_9, %c0_10] : memref<1x1xf32, #tpu.memory_space<vmem>>, vector<1x1xf32>
    %c0_i32 = arith.constant 0 : i32
    %c128_i32 = arith.constant 128 : i32
    %6 = arith.muli %c0_i32, %c128_i32 : i32
    %7 = tpu.assume_multiple %6, 128 : i32
    %c0_11 = arith.constant 0 : index
    %8 = arith.index_cast %7 : i32 to index
    %9 = vector.load %arg1[%c0_11, %8] : memref<1x128xf32, #tpu.memory_space<vmem>>, vector<1x128xf32>
    %10 = vector.broadcast %0 : vector<128x1xf32> to vector<128x128xf32>
    %11 = vector.broadcast %9 : vector<1x128xf32> to vector<128x128xf32>
    %12 = arith.mulf %10, %11 : vector<128x128xf32>
    %13 = vector.broadcast %1 : vector<128x1xf32> to vector<128x128xf32>
    %14 = arith.addf %12, %13 : vector<128x128xf32>
    %15 = math.tanh %14 : vector<128x128xf32>
    %cst = arith.constant dense<0.000000e+00> : vector<128x128xf32>
    %16 = tpu.matmul %2, %15, %cst {dimension_numbers = #tpu.dot_dimension_numbers<[1], [0], [0], [1], [0, 0, 1, 1], [], []>} : vector<128x128xf32>, vector<128x128xf32>, vector<128x128xf32> -> vector<128x128xf32>
    %17 = vector.broadcast %3 : vector<128x1xf32> to vector<128x128xf32>
    %18 = arith.addf %16, %17 : vector<128x128xf32>
    %19 = math.tanh %18 : vector<128x128xf32>
    %cst_12 = arith.constant dense<0.000000e+00> : vector<1x128xf32>
    %20 = tpu.matmul %4, %19, %cst_12 {dimension_numbers = #tpu.dot_dimension_numbers<[1], [0], [0], [1], [0, 0, 1, 1], [], []>} : vector<1x128xf32>, vector<128x128xf32>, vector<1x128xf32> -> vector<1x128xf32>
    %21 = vector.broadcast %5 : vector<1x1xf32> to vector<1x128xf32>
    %22 = arith.addf %20, %21 : vector<1x128xf32>
    %c0_13 = arith.constant 0 : index
    %23 = arith.index_cast %7 : i32 to index
    %24 = vector.load %arg8[%c0_13, %23] : memref<1x128xf32, #tpu.memory_space<vmem>>, vector<1x128xf32>
    tpu.vector_store %arg8[%c0_13, %23], %22 {strides = array<i32>} : memref<1x128xf32, #tpu.memory_space<vmem>>, vector<1x128xf32>,
    %c1_i32 = arith.constant 1 : i32
    return
  }
  func.func @transform_0(%arg0: i32) -> (i32, i32) {
    %c0_i32 = arith.constant 0 : i32
    %c0_i32_0 = arith.constant 0 : i32
    return %c0_i32, %arg0 : i32, i32
  }
  func.func @transform_1(%arg0: i32) -> (i32, i32) {
    %c0_i32 = arith.constant 0 : i32
    %c0_i32_0 = arith.constant 0 : i32
    %c0_i32_1 = arith.constant 0 : i32
    return %c0_i32, %c0_i32_0 : i32, i32
  }
  func.func @transform_2(%arg0: i32) -> (i32, i32) {
    %c0_i32 = arith.constant 0 : i32
    %c0_i32_0 = arith.constant 0 : i32
    %c0_i32_1 = arith.constant 0 : i32
    return %c0_i32, %c0_i32_0 : i32, i32
  }
  func.func @transform_3(%arg0: i32) -> (i32, i32) {
    %c0_i32 = arith.constant 0 : i32
    %c0_i32_0 = arith.constant 0 : i32
    %c0_i32_1 = arith.constant 0 : i32
    return %c0_i32, %c0_i32_0 : i32, i32
  }
  func.func @transform_4(%arg0: i32) -> (i32, i32) {
    %c0_i32 = arith.constant 0 : i32
    %c0_i32_0 = arith.constant 0 : i32
    %c0_i32_1 = arith.constant 0 : i32
    return %c0_i32, %c0_i32_0 : i32, i32
  }
  func.func @transform_5(%arg0: i32) -> (i32, i32) {
    %c0_i32 = arith.constant 0 : i32
    %c0_i32_0 = arith.constant 0 : i32
    %c0_i32_1 = arith.constant 0 : i32
    return %c0_i32, %c0_i32_0 : i32, i32
  }
  func.func @transform_6(%arg0: i32) -> (i32, i32) {
    %c0_i32 = arith.constant 0 : i32
    %c0_i32_0 = arith.constant 0 : i32
    %c0_i32_1 = arith.constant 0 : i32
    return %c0_i32, %c0_i32_0 : i32, i32
  }
  func.func @transform_7(%arg0: i32) -> (i32, i32) {
    %c0_i32 = arith.constant 0 : i32
    %c0_i32_0 = arith.constant 0 : i32
    return %c0_i32, %arg0 : i32, i32
  }
}

</mosaic_0001>

<llo_original>
// kernel: tpu_custom_call.1
$region0: #{tpu_custom_call.1}
  #allocation0 [shape = 'u32[]', space=smem, size = 0x4, offset = 0x4, fixed_abs, tag = 'smem constant byte address 0x4 - core index']
  #allocation1 [shape = 'u32[144,128]{1,0:T(1,128)}', space=vmem, size = 0x12000, scoped, tag = 'internal scratch']
  #allocation2 [shape = 'f32[1,1]{1,0:T(1,128)S(1)}', space=vmem, size = 0x200, scoped, tag = 'scoped memory for tpu_custom_call.1']
  %s0 = inlined_call_operand.vmem [shape: f32[1,128], index: 0, kind: input, shape index: {}]
  %s1 = inlined_call_operand.vmem [shape: f32[128,1], index: 1, kind: input, shape index: {}]
  %s2 = inlined_call_operand.vmem [shape: f32[128,1], index: 2, kind: input, shape index: {}]
  %s3 = inlined_call_operand.vmem [shape: f32[128,128], index: 3, kind: input, shape index: {}]
  %s4 = inlined_call_operand.vmem [shape: f32[128,1], index: 4, kind: input, shape index: {}]
  %s5 = inlined_call_operand.vmem [shape: f32[1,128], index: 5, kind: input, shape index: {}]
  %s6 = inlined_call_operand.<no memory space> [shape: f32[1,1], index: 6, kind: input, shape index: {}]
  %s7 = inlined_call_operand.hbm [shape: f32[1,128], index: 7, kind: output, shape index: {}]
  %s8 = sld [smem:[#allocation0]]
  $region38: #{tpu_custom_call.1} parent=0
    _
  %s10 = ssub.s32 1, %s8
  %s11 = scalar_select 0, %s10, %s8
  %v12 = vstv %s6
  %13 = vst [vmem:[#allocation2] sm:$0x1] %v12
  $region1: #{tpu_custom_call.1} parent=0
    #allocation3 [shape = 'u8[512]{0}', space=vmem, size = 0x400, scoped, tag = 'output window, operand 0, single buffered']
    #allocation4 [shape = 's32[1]{0}', space=sflag, size = 0x4, scoped, tag = 'scoped memory for tpu_custom_call.1']
    %14 = vsyncpa [#allocation4], 0
    // Predicated region
    $region2: #{tpu_custom_call.1} parent=1 // pred_check
      _
    $region3: #{tpu_custom_call.1} parent=1 // pred_check_branch
      %16 = sbr.rel (0) target = $region5
    $region4: #{tpu_custom_call.1} parent=1 // pred_region
      _
    $region5: #{tpu_custom_call.1} parent=1 // pred_fallthru
      _
    // Predicated region
    $region6: #{tpu_custom_call.1} parent=1 // pred_check
      _
    $region7: #{tpu_custom_call.1} parent=1 // pred_check_branch
      %18 = sbr.rel (0) target = $region9
    $region8: #{tpu_custom_call.1} parent=1 // pred_region
      _
    $region9: #{tpu_custom_call.1} parent=1 // pred_fallthru
      _
    // Predicated region
    $region10: #{tpu_custom_call.1} parent=1 // pred_check
      _
    $region11: #{tpu_custom_call.1} parent=1 // pred_check_branch
      %20 = sbr.rel (0) target = $region13
    $region12: #{tpu_custom_call.1} parent=1 // pred_region
      _
    $region13: #{tpu_custom_call.1} parent=1 // pred_fallthru
      _
    // Predicated region
    $region14: #{tpu_custom_call.1} parent=1 // pred_check
      _
    $region15: #{tpu_custom_call.1} parent=1 // pred_check_branch
      %22 = sbr.rel (0) target = $region17
    $region16: #{tpu_custom_call.1} parent=1 // pred_region
      _
    $region17: #{tpu_custom_call.1} parent=1 // pred_fallthru
      _
    // Predicated region
    $region18: #{tpu_custom_call.1} parent=1 // pred_check
      _
    $region19: #{tpu_custom_call.1} parent=1 // pred_check_branch
      %24 = sbr.rel (0) target = $region21
    $region20: #{tpu_custom_call.1} parent=1 // pred_region
      _
    $region21: #{tpu_custom_call.1} parent=1 // pred_fallthru
      _
    // Predicated region
    $region22: #{tpu_custom_call.1} parent=1 // pred_check
      _
    $region23: #{tpu_custom_call.1} parent=1 // pred_check_branch
      %26 = sbr.rel (0) target = $region25
    $region24: #{tpu_custom_call.1} parent=1 // pred_region
      _
    $region25: #{tpu_custom_call.1} parent=1 // pred_fallthru
      _
    // Predicated region
    $region26: #{tpu_custom_call.1} parent=1 // pred_check
      _
    $region27: #{tpu_custom_call.1} parent=1 // pred_check_branch
      %28 = sbr.rel (0) target = $region29
    $region28: #{tpu_custom_call.1} parent=1 // pred_region
      _
    $region29: #{tpu_custom_call.1} parent=1 // pred_fallthru
      _
    %v29 = vld [vmem:[%s1] sm:$0xff]
    %v30 = vld [vmem:[%s1 + $0x8] sm:$0xff]
    %v31 = vld [vmem:[%s1 + $0x10] sm:$0xff]
    %v32 = vld [vmem:[%s1 + $0x18] sm:$0xff]
    %v33 = vld [vmem:[%s1 + $0x20] sm:$0xff]
    %v34 = vld [vmem:[%s1 + $0x28] sm:$0xff]
    %v35 = vld [vmem:[%s1 + $0x30] sm:$0xff]
    %v36 = vld [vmem:[%s1 + $0x38] sm:$0xff]
    %v37 = vld [vmem:[%s1 + $0x40] sm:$0xff]
    %v38 = vld [vmem:[%s1 + $0x48] sm:$0xff]
    %v39 = vld [vmem:[%s1 + $0x50] sm:$0xff]
    %v40 = vld [vmem:[%s1 + $0x58] sm:$0xff]
    %v41 = vld [vmem:[%s1 + $0x60] sm:$0xff]
    %v42 = vld [vmem:[%s1 + $0x68] sm:$0xff]
    %v43 = vld [vmem:[%s1 + $0x70] sm:$0xff]
    %v44 = vld [vmem:[%s1 + $0x78] sm:$0xff]
    %v45 = vld [vmem:[%s2] sm:$0xff]
    %v46 = vld [vmem:[%s2 + $0x8] sm:$0xff]
    %v47 = vld [vmem:[%s2 + $0x10] sm:$0xff]
    %v48 = vld [vmem:[%s2 + $0x18] sm:$0xff]
    %v49 = vld [vmem:[%s2 + $0x20] sm:$0xff]
    %v50 = vld [vmem:[%s2 + $0x28] sm:$0xff]
    %v51 = vld [vmem:[%s2 + $0x30] sm:$0xff]
    %v52 = vld [vmem:[%s2 + $0x38] sm:$0xff]
    %v53 = vld [vmem:[%s2 + $0x40] sm:$0xff]
    %v54 = vld [vmem:[%s2 + $0x48] sm:$0xff]
    %v55 = vld [vmem:[%s2 + $0x50] sm:$0xff]
    %v56 = vld [vmem:[%s2 + $0x58] sm:$0xff]
    %v57 = vld [vmem:[%s2 + $0x60] sm:$0xff]
    %v58 = vld [vmem:[%s2 + $0x68] sm:$0xff]
    %v59 = vld [vmem:[%s2 + $0x70] sm:$0xff]
    %v60 = vld [vmem:[%s2 + $0x78] sm:$0xff]
    %v61 = vld [vmem:[%s3] sm:$0xff]
    %v62 = vld [vmem:[%s3 + $0x8] sm:$0xff]
    %v63 = vld [vmem:[%s3 + $0x10] sm:$0xff]
    %v64 = vld [vmem:[%s3 + $0x18] sm:$0xff]
    %v65 = vld [vmem:[%s3 + $0x20] sm:$0xff]
    %v66 = vld [vmem:[%s3 + $0x28] sm:$0xff]
    %v67 = vld [vmem:[%s3 + $0x30] sm:$0xff]
    %v68 = vld [vmem:[%s3 + $0x38] sm:$0xff]
    %v69 = vld [vmem:[%s3 + $0x40] sm:$0xff]
    %v70 = vld [vmem:[%s3 + $0x48] sm:$0xff]
    %v71 = vld [vmem:[%s3 + $0x50] sm:$0xff]
    %v72 = vld [vmem:[%s3 + $0x58] sm:$0xff]
    %v73 = vld [vmem:[%s3 + $0x60] sm:$0xff]
    %v74 = vld [vmem:[%s3 + $0x68] sm:$0xff]
    %v75 = vld [vmem:[%s3 + $0x70] sm:$0xff]
    %v76 = vld [vmem:[%s3 + $0x78] sm:$0xff]
    %v77 = vld [vmem:[%s4] sm:$0xff]
    %v78 = vld [vmem:[%s4 + $0x8] sm:$0xff]
    %v79 = vld [vmem:[%s4 + $0x10] sm:$0xff]
    %v80 = vld [vmem:[%s4 + $0x18] sm:$0xff]
    %v81 = vld [vmem:[%s4 + $0x20] sm:$0xff]
    %v82 = vld [vmem:[%s4 + $0x28] sm:$0xff]
    %v83 = vld [vmem:[%s4 + $0x30] sm:$0xff]
    %v84 = vld [vmem:[%s4 + $0x38] sm:$0xff]
    %v85 = vld [vmem:[%s4 + $0x40] sm:$0xff]
    %v86 = vld [vmem:[%s4 + $0x48] sm:$0xff]
    %v87 = vld [vmem:[%s4 + $0x50] sm:$0xff]
    %v88 = vld [vmem:[%s4 + $0x58] sm:$0xff]
    %v89 = vld [vmem:[%s4 + $0x60] sm:$0xff]
    %v90 = vld [vmem:[%s4 + $0x68] sm:$0xff]
    %v91 = vld [vmem:[%s4 + $0x70] sm:$0xff]
    %v92 = vld [vmem:[%s4 + $0x78] sm:$0xff]
    %v93 = vld [vmem:[%s5] sm:$0x1]
    %v94 = vld [vmem:[#allocation2] sm:$0x1]
    %v95 = vld [vmem:[%s0] sm:$0x1]
    %97 = vset.pattern.permute.xlu0 0
    %98 = vperm.xlu0 %97, %v29
    %v99 = vpop.permute.xlu0 %98
    %102 = vset.pattern.permute.xlu0 0
    %103 = vperm.xlu0 %102, %v30
    %v104 = vpop.permute.xlu0 %103
    %107 = vset.pattern.permute.xlu0 0
    %108 = vperm.xlu0 %107, %v31
    %v109 = vpop.permute.xlu0 %108
    %112 = vset.pattern.permute.xlu0 0
    %113 = vperm.xlu0 %112, %v32
    %v114 = vpop.permute.xlu0 %113
    %117 = vset.pattern.permute.xlu0 0
    %118 = vperm.xlu0 %117, %v33
    %v119 = vpop.permute.xlu0 %118
    %122 = vset.pattern.permute.xlu0 0
    %123 = vperm.xlu0 %122, %v34
    %v124 = vpop.permute.xlu0 %123
    %127 = vset.pattern.permute.xlu0 0
    %128 = vperm.xlu0 %127, %v35
    %v129 = vpop.permute.xlu0 %128
    %132 = vset.pattern.permute.xlu0 0
    %133 = vperm.xlu0 %132, %v36
    %v134 = vpop.permute.xlu0 %133
    %137 = vset.pattern.permute.xlu0 0
    %138 = vperm.xlu0 %137, %v37
    %v139 = vpop.permute.xlu0 %138
    %142 = vset.pattern.permute.xlu0 0
    %143 = vperm.xlu0 %142, %v38
    %v144 = vpop.permute.xlu0 %143
    %147 = vset.pattern.permute.xlu0 0
    %148 = vperm.xlu0 %147, %v39
    %v149 = vpop.permute.xlu0 %148
    %152 = vset.pattern.permute.xlu0 0
    %153 = vperm.xlu0 %152, %v40
    %v154 = vpop.permute.xlu0 %153
    %157 = vset.pattern.permute.xlu0 0
    %158 = vperm.xlu0 %157, %v41
    %v159 = vpop.permute.xlu0 %158
    %162 = vset.pattern.permute.xlu0 0
    %163 = vperm.xlu0 %162, %v42
    %v164 = vpop.permute.xlu0 %163
    %167 = vset.pattern.permute.xlu0 0
    %168 = vperm.xlu0 %167, %v43
    %v169 = vpop.permute.xlu0 %168
    %172 = vset.pattern.permute.xlu0 0
    %173 = vperm.xlu0 %172, %v44
    %v174 = vpop.permute.xlu0 %173
    %v177 = vlaneseq
    %v178 = vshrl.u32 %v177, 7
    %v179 = vsub.s32 0, %v178
    %v180 = vrot.slane %v95, %v179
    %v182 = vmul.f32 %v99, %v180
    %v183 = vmul.f32 %v104, %v180
    %v184 = vmul.f32 %v109, %v180
    %v185 = vmul.f32 %v114, %v180
    %v186 = vmul.f32 %v119, %v180
    %v187 = vmul.f32 %v124, %v180
    %v188 = vmul.f32 %v129, %v180
    %v189 = vmul.f32 %v134, %v180
    %v190 = vmul.f32 %v139, %v180
    %v191 = vmul.f32 %v144, %v180
    %v192 = vmul.f32 %v149, %v180
    %v193 = vmul.f32 %v154, %v180
    %v194 = vmul.f32 %v159, %v180
    %v195 = vmul.f32 %v164, %v180
    %v196 = vmul.f32 %v169, %v180
    %v197 = vmul.f32 %v174, %v180
    %199 = vset.pattern.permute.xlu0 0
    %200 = vperm.xlu0 %199, %v45
    %v201 = vpop.permute.xlu0 %200
    %204 = vset.pattern.permute.xlu0 0
    %205 = vperm.xlu0 %204, %v46
    %v206 = vpop.permute.xlu0 %205
    %209 = vset.pattern.permute.xlu0 0
    %210 = vperm.xlu0 %209, %v47
    %v211 = vpop.permute.xlu0 %210
    %214 = vset.pattern.permute.xlu0 0
    %215 = vperm.xlu0 %214, %v48
    %v216 = vpop.permute.xlu0 %215
    %219 = vset.pattern.permute.xlu0 0
    %220 = vperm.xlu0 %219, %v49
    %v221 = vpop.permute.xlu0 %220
    %224 = vset.pattern.permute.xlu0 0
    %225 = vperm.xlu0 %224, %v50
    %v226 = vpop.permute.xlu0 %225
    %229 = vset.pattern.permute.xlu0 0
    %230 = vperm.xlu0 %229, %v51
    %v231 = vpop.permute.xlu0 %230
    %234 = vset.pattern.permute.xlu0 0
    %235 = vperm.xlu0 %234, %v52
    %v236 = vpop.permute.xlu0 %235
    %239 = vset.pattern.permute.xlu0 0
    %240 = vperm.xlu0 %239, %v53
    %v241 = vpop.permute.xlu0 %240
    %244 = vset.pattern.permute.xlu0 0
    %245 = vperm.xlu0 %244, %v54
    %v246 = vpop.permute.xlu0 %245
    %249 = vset.pattern.permute.xlu0 0
    %250 = vperm.xlu0 %249, %v55
    %v251 = vpop.permute.xlu0 %250
    %254 = vset.pattern.permute.xlu0 0
    %255 = vperm.xlu0 %254, %v56
    %v256 = vpop.permute.xlu0 %255
    %259 = vset.pattern.permute.xlu0 0
    %260 = vperm.xlu0 %259, %v57
    %v261 = vpop.permute.xlu0 %260
    %264 = vset.pattern.permute.xlu0 0
    %265 = vperm.xlu0 %264, %v58
    %v266 = vpop.permute.xlu0 %265
    %269 = vset.pattern.permute.xlu0 0
    %270 = vperm.xlu0 %269, %v59
    %v271 = vpop.permute.xlu0 %270
    %274 = vset.pattern.permute.xlu0 0
    %275 = vperm.xlu0 %274, %v60
    %v276 = vpop.permute.xlu0 %275
    %v278 = vadd.f32 %v182, %v201
    %v279 = vadd.f32 %v183, %v206
    %v280 = vadd.f32 %v184, %v211
    %v281 = vadd.f32 %v185, %v216
    %v282 = vadd.f32 %v186, %v221
    %v283 = vadd.f32 %v187, %v226
    %v284 = vadd.f32 %v188, %v231
    %v285 = vadd.f32 %v189, %v236
    %v286 = vadd.f32 %v190, %v241
    %v287 = vadd.f32 %v191, %v246
    %v288 = vadd.f32 %v192, %v251
    %v289 = vadd.f32 %v193, %v256
    %v290 = vadd.f32 %v194, %v261
    %v291 = vadd.f32 %v195, %v266
    %v292 = vadd.f32 %v196, %v271
    %v293 = vadd.f32 %v197, %v276
    %v294 = vtanh.pop %v278
    %v295 = vtanh.pop %v279
    %v296 = vtanh.pop %v280
    %v297 = vtanh.pop %v281
    %v298 = vtanh.pop %v282
    %v299 = vtanh.pop %v283
    %v300 = vtanh.pop %v284
    %v301 = vtanh.pop %v285
    %v302 = vtanh.pop %v286
    %v303 = vtanh.pop %v287
    %v304 = vtanh.pop %v288
    %v305 = vtanh.pop %v289
    %v306 = vtanh.pop %v290
    %v307 = vtanh.pop %v291
    %v308 = vtanh.pop %v292
    %v309 = vtanh.pop %v293
    %311 = vset.pattern.permute.xlu0 0
    %312 = vperm.xlu0 %311, %v77
    %v313 = vpop.permute.xlu0 %312
    %316 = vset.pattern.permute.xlu0 0
    %317 = vperm.xlu0 %316, %v78
    %v318 = vpop.permute.xlu0 %317
    %321 = vset.pattern.permute.xlu0 0
    %322 = vperm.xlu0 %321, %v79
    %v323 = vpop.permute.xlu0 %322
    %326 = vset.pattern.permute.xlu0 0
    %327 = vperm.xlu0 %326, %v80
    %v328 = vpop.permute.xlu0 %327
    %331 = vset.pattern.permute.xlu0 0
    %332 = vperm.xlu0 %331, %v81
    %v333 = vpop.permute.xlu0 %332
    %336 = vset.pattern.permute.xlu0 0
    %337 = vperm.xlu0 %336, %v82
    %v338 = vpop.permute.xlu0 %337
    %341 = vset.pattern.permute.xlu0 0
    %342 = vperm.xlu0 %341, %v83
    %v343 = vpop.permute.xlu0 %342
    %346 = vset.pattern.permute.xlu0 0
    %347 = vperm.xlu0 %346, %v84
    %v348 = vpop.permute.xlu0 %347
    %351 = vset.pattern.permute.xlu0 0
    %352 = vperm.xlu0 %351, %v85
    %v353 = vpop.permute.xlu0 %352
    %356 = vset.pattern.permute.xlu0 0
    %357 = vperm.xlu0 %356, %v86
    %v358 = vpop.permute.xlu0 %357
    %361 = vset.pattern.permute.xlu0 0
    %362 = vperm.xlu0 %361, %v87
    %v363 = vpop.permute.xlu0 %362
    %366 = vset.pattern.permute.xlu0 0
    %367 = vperm.xlu0 %366, %v88
    %v368 = vpop.permute.xlu0 %367
    %371 = vset.pattern.permute.xlu0 0
    %372 = vperm.xlu0 %371, %v89
    %v373 = vpop.permute.xlu0 %372
    %376 = vset.pattern.permute.xlu0 0
    %377 = vperm.xlu0 %376, %v90
    %v378 = vpop.permute.xlu0 %377
    %381 = vset.pattern.permute.xlu0 0
    %382 = vperm.xlu0 %381, %v91
    %v383 = vpop.permute.xlu0 %382
    %386 = vset.pattern.permute.xlu0 0
    %387 = vperm.xlu0 %386, %v92
    %v388 = vpop.permute.xlu0 %387
    %390 = vmatprep.subr.mxu0 0.0
    %391 = vmatpush1.msra.mxu0 %v309
    %392 = vmatprep.subr.mxu0 0.0
    %393 = vmatpush1.msra.mxu0 %v308
    %394 = vmatprep.subr.mxu0 0.0
    %395 = vmatpush1.msra.mxu0 %v307
    %396 = vmatprep.subr.mxu0 0.0
    %397 = vmatpush1.msra.mxu0 %v306
    %398 = vmatprep.subr.mxu0 0.0
    %399 = vmatpush1.msra.mxu0 %v305
    %400 = vmatprep.subr.mxu0 0.0
    %401 = vmatpush1.msra.mxu0 %v304
    %402 = vmatprep.subr.mxu0 0.0
    %403 = vmatpush1.msra.mxu0 %v303
    %404 = vmatprep.subr.mxu0 0.0
    %405 = vmatpush1.msra.mxu0 %v302
    %406 = vmatprep.subr.mxu0 0.0
    %407 = vmatpush1.msra.mxu0 %v301
    %408 = vmatprep.subr.mxu0 0.0
    %409 = vmatpush1.msra.mxu0 %v300
    %410 = vmatprep.subr.mxu0 0.0
    %411 = vmatpush1.msra.mxu0 %v299
    %412 = vmatprep.subr.mxu0 0.0
    %413 = vmatpush1.msra.mxu0 %v298
    %414 = vmatprep.subr.mxu0 0.0
    %415 = vmatpush1.msra.mxu0 %v297
    %416 = vmatprep.subr.mxu0 0.0
    %417 = vmatpush1.msra.mxu0 %v296
    %418 = vmatprep.subr.mxu0 0.0
    %419 = vmatpush1.msra.mxu0 %v295
    %420 = vmatprep.subr.mxu0 0.0
    %421 = vmatpush1.msra.mxu0 %v294
    %422 = vmatprep.subr.mxu0 0.0
    %423 = vmatpush2.msra.mxu0 0.0
    %424 = vmatprep.subr.mxu0 0.0
    %425 = vmatpush2.msra.mxu0 0.0
    %426 = vmatprep.subr.mxu0 0.0
    %427 = vmatpush2.msra.mxu0 0.0
    %428 = vmatprep.subr.mxu0 0.0
    %429 = vmatpush2.msra.mxu0 0.0
    %430 = vmatprep.subr.mxu0 0.0
    %431 = vmatpush2.msra.mxu0 0.0
    %432 = vmatprep.subr.mxu0 0.0
    %433 = vmatpush2.msra.mxu0 0.0
    %434 = vmatprep.subr.mxu0 0.0
    %435 = vmatpush2.msra.mxu0 0.0
    %436 = vmatprep.subr.mxu0 0.0
    %437 = vmatpush2.msra.mxu0 0.0
    %438 = vmatprep.subr.mxu0 0.0
    %439 = vmatpush2.msra.mxu0 0.0
    %440 = vmatprep.subr.mxu0 0.0
    %441 = vmatpush2.msra.mxu0 0.0
    %442 = vmatprep.subr.mxu0 0.0
    %443 = vmatpush2.msra.mxu0 0.0
    %444 = vmatprep.subr.mxu0 0.0
    %445 = vmatpush2.msra.mxu0 0.0
    %446 = vmatprep.subr.mxu0 0.0
    %447 = vmatpush2.msra.mxu0 0.0
    %448 = vmatprep.subr.mxu0 0.0
    %449 = vmatpush2.msra.mxu0 0.0
    %450 = vmatprep.subr.mxu0 0.0
    %451 = vmatpush2.msra.mxu0 0.0
    %452 = vmatprep.subr.mxu0 0.0
    %453 = vmatpush2.msra.mxu0 0.0
    %454 = vmatprep.mubr.f32.mxu0 0.0
    %455 = vmatmul.mubr.f32.gmra.mxu0 %v61
    %v456 = vpop.f32.mrf.mxu0
    %v457 = vadd.f32 %v313, %v456
    %v458 = vpop.f32.mrf.mxu0
    %459 = vmatprep.mubr.f32.mxu0 0.0
    %460 = vmatmul.mubr.f32.gmra.mxu0 %v62
    %v461 = vpop.f32.mrf.mxu0
    %v462 = vadd.f32 %v318, %v461
    %v463 = vpop.f32.mrf.mxu0
    %464 = vmatprep.mubr.f32.mxu0 0.0
    %465 = vmatmul.mubr.f32.gmra.mxu0 %v63
    %v466 = vpop.f32.mrf.mxu0
    %v467 = vadd.f32 %v323, %v466
    %v468 = vpop.f32.mrf.mxu0
    %469 = vmatprep.mubr.f32.mxu0 0.0
    %470 = vmatmul.mubr.f32.gmra.mxu0 %v64
    %v471 = vpop.f32.mrf.mxu0
    %v472 = vadd.f32 %v328, %v471
    %v473 = vpop.f32.mrf.mxu0
    %474 = vmatprep.mubr.f32.mxu0 0.0
    %475 = vmatmul.mubr.f32.gmra.mxu0 %v65
    %v476 = vpop.f32.mrf.mxu0
    %v477 = vadd.f32 %v333, %v476
    %v478 = vpop.f32.mrf.mxu0
    %479 = vmatprep.mubr.f32.mxu0 0.0
    %480 = vmatmul.mubr.f32.gmra.mxu0 %v66
    %v481 = vpop.f32.mrf.mxu0
    %v482 = vadd.f32 %v338, %v481
    %v483 = vpop.f32.mrf.mxu0
    %484 = vmatprep.mubr.f32.mxu0 0.0
    %485 = vmatmul.mubr.f32.gmra.mxu0 %v67
    %v486 = vpop.f32.mrf.mxu0
    %v487 = vadd.f32 %v343, %v486
    %v488 = vpop.f32.mrf.mxu0
    %489 = vmatprep.mubr.f32.mxu0 0.0
    %490 = vmatmul.mubr.f32.gmra.mxu0 %v68
    %v491 = vpop.f32.mrf.mxu0
    %v492 = vadd.f32 %v348, %v491
    %v493 = vpop.f32.mrf.mxu0
    %494 = vmatprep.mubr.f32.mxu0 0.0
    %495 = vmatmul.mubr.f32.gmra.mxu0 %v69
    %v496 = vpop.f32.mrf.mxu0
    %v497 = vadd.f32 %v353, %v496
    %v498 = vpop.f32.mrf.mxu0
    %499 = vmatprep.mubr.f32.mxu0 0.0
    %500 = vmatmul.mubr.f32.gmra.mxu0 %v70
    %v501 = vpop.f32.mrf.mxu0
    %v502 = vadd.f32 %v358, %v501
    %v503 = vpop.f32.mrf.mxu0
    %504 = vmatprep.mubr.f32.mxu0 0.0
    %505 = vmatmul.mubr.f32.gmra.mxu0 %v71
    %v506 = vpop.f32.mrf.mxu0
    %v507 = vadd.f32 %v363, %v506
    %v508 = vpop.f32.mrf.mxu0
    %509 = vmatprep.mubr.f32.mxu0 0.0
    %510 = vmatmul.mubr.f32.gmra.mxu0 %v72
    %v511 = vpop.f32.mrf.mxu0
    %v512 = vadd.f32 %v368, %v511
    %v513 = vpop.f32.mrf.mxu0
    %514 = vmatprep.mubr.f32.mxu0 0.0
    %515 = vmatmul.mubr.f32.gmra.mxu0 %v73
    %v516 = vpop.f32.mrf.mxu0
    %v517 = vadd.f32 %v373, %v516
    %v518 = vpop.f32.mrf.mxu0
    %519 = vmatprep.mubr.f32.mxu0 0.0
    %520 = vmatmul.mubr.f32.gmra.mxu0 %v74
    %v521 = vpop.f32.mrf.mxu0
    %v522 = vadd.f32 %v378, %v521
    %v523 = vpop.f32.mrf.mxu0
    %524 = vmatprep.mubr.f32.mxu0 0.0
    %525 = vmatmul.mubr.f32.gmra.mxu0 %v75
    %v526 = vpop.f32.mrf.mxu0
    %v527 = vadd.f32 %v383, %v526
    %v528 = vpop.f32.mrf.mxu0
    %529 = vmatprep.mubr.f32.mxu0 0.0
    %530 = vmatmul.mubr.f32.gmra.mxu0 %v76
    %v531 = vpop.f32.mrf.mxu0
    %v532 = vadd.f32 %v388, %v531
    %v533 = vpop.f32.mrf.mxu0
    %534 = vdwg.mxu0
    %v535 = vtanh.pop %v457
    %v536 = vtanh.pop %v462
    %v537 = vtanh.pop %v467
    %v538 = vtanh.pop %v472
    %v539 = vtanh.pop %v477
    %v540 = vtanh.pop %v482
    %v541 = vtanh.pop %v487
    %v542 = vtanh.pop %v492
    %v543 = vtanh.pop %v497
    %v544 = vtanh.pop %v502
    %v545 = vtanh.pop %v507
    %v546 = vtanh.pop %v512
    %v547 = vtanh.pop %v517
    %v548 = vtanh.pop %v522
    %v549 = vtanh.pop %v527
    %v550 = vtanh.pop %v532
    %552 = vset.pattern.permute.xlu0 0
    %553 = vperm.xlu0 %552, %v94
    %v554 = vpop.permute.xlu0 %553
    %v556 = vlaneseq
    %v557 = vshrl.u32 %v556, 7
    %v558 = vsub.s32 0, %v557
    %v559 = vrot.slane %v554, %v558
    %560 = vmatprep.subr.mxu0 0.0
    %561 = vmatpush1.msra.mxu0 %v550
    %562 = vmatprep.subr.mxu0 0.0
    %563 = vmatpush1.msra.mxu0 %v549
    %564 = vmatprep.subr.mxu0 0.0
    %565 = vmatpush1.msra.mxu0 %v548
    %566 = vmatprep.subr.mxu0 0.0
    %567 = vmatpush1.msra.mxu0 %v547
    %568 = vmatprep.subr.mxu0 0.0
    %569 = vmatpush1.msra.mxu0 %v546
    %570 = vmatprep.subr.mxu0 0.0
    %571 = vmatpush1.msra.mxu0 %v545
    %572 = vmatprep.subr.mxu0 0.0
    %573 = vmatpush1.msra.mxu0 %v544
    %574 = vmatprep.subr.mxu0 0.0
    %575 = vmatpush1.msra.mxu0 %v543
    %576 = vmatprep.subr.mxu0 0.0
    %577 = vmatpush1.msra.mxu0 %v542
    %578 = vmatprep.subr.mxu0 0.0
    %579 = vmatpush1.msra.mxu0 %v541
    %580 = vmatprep.subr.mxu0 0.0
    %581 = vmatpush1.msra.mxu0 %v540
    %582 = vmatprep.subr.mxu0 0.0
    %583 = vmatpush1.msra.mxu0 %v539
    %584 = vmatprep.subr.mxu0 0.0
    %585 = vmatpush1.msra.mxu0 %v538
    %586 = vmatprep.subr.mxu0 0.0
    %587 = vmatpush1.msra.mxu0 %v537
    %588 = vmatprep.subr.mxu0 0.0
    %589 = vmatpush1.msra.mxu0 %v536
    %590 = vmatprep.subr.mxu0 0.0
    %591 = vmatpush1.msra.mxu0 %v535
    %592 = vmatprep.subr.mxu0 0.0
    %593 = vmatpush2.msra.mxu0 0.0
    %594 = vmatprep.subr.mxu0 0.0
    %595 = vmatpush2.msra.mxu0 0.0
    %596 = vmatprep.subr.mxu0 0.0
    %597 = vmatpush2.msra.mxu0 0.0
    %598 = vmatprep.subr.mxu0 0.0
    %599 = vmatpush2.msra.mxu0 0.0
    %600 = vmatprep.subr.mxu0 0.0
    %601 = vmatpush2.msra.mxu0 0.0
    %602 = vmatprep.subr.mxu0 0.0
    %603 = vmatpush2.msra.mxu0 0.0
    %604 = vmatprep.subr.mxu0 0.0
    %605 = vmatpush2.msra.mxu0 0.0
    %606 = vmatprep.subr.mxu0 0.0
    %607 = vmatpush2.msra.mxu0 0.0
    %608 = vmatprep.subr.mxu0 0.0
    %609 = vmatpush2.msra.mxu0 0.0
    %610 = vmatprep.subr.mxu0 0.0
    %611 = vmatpush2.msra.mxu0 0.0
    %612 = vmatprep.subr.mxu0 0.0
    %613 = vmatpush2.msra.mxu0 0.0
    %614 = vmatprep.subr.mxu0 0.0
    %615 = vmatpush2.msra.mxu0 0.0
    %616 = vmatprep.subr.mxu0 0.0
    %617 = vmatpush2.msra.mxu0 0.0
    %618 = vmatprep.subr.mxu0 0.0
    %619 = vmatpush2.msra.mxu0 0.0
    %620 = vmatprep.subr.mxu0 0.0
    %621 = vmatpush2.msra.mxu0 0.0
    %622 = vmatprep.subr.mxu0 0.0
    %623 = vmatpush2.msra.mxu0 0.0
    %624 = vmatprep.mubr.f32.mxu0 0.0
    %625 = vmatmul.mubr.f32.gmra.mxu0 %v93
    %v626 = vpop.f32.mrf.mxu0
    %v627 = vadd.f32 %v559, %v626
    %v628 = vpop.f32.mrf.mxu0
    %629 = vdwg.mxu0
    %630 = vst [vmem:[#allocation3] sm:$0x1] %v627
    // Predicated region
    $region30: #{tpu_custom_call.1} parent=1 // pred_check
      _
    $region31: #{tpu_custom_call.1} parent=1 // pred_check_branch
      %632 = sbr.rel (0) target = $region33
    $region32: #{tpu_custom_call.1} parent=1 // pred_region
      %s634 = ssub.s32 16, 16
      %635 = vsyncadd [#allocation4], %s634
      %s637 = sshll.u32 [#allocation3], 4
      %s638 = int_to_ptr.vmem [resolvable:$true] %s637
      %640 = dma.vmem_to_hbm [thread:$0]  %s638, 16, %s7, [#allocation4]
    $region33: #{tpu_custom_call.1} parent=1 // pred_fallthru
      _
    // Predicated region
    $region34: #{tpu_custom_call.1} parent=1 // pred_check
      _
    $region35: #{tpu_custom_call.1} parent=1 // pred_check_branch
      %642 = sbr.rel (0) target = $region37
    $region36: #{tpu_custom_call.1} parent=1 // pred_region
      %643 = dma.done [#allocation4], 16
    $region37: #{tpu_custom_call.1} parent=1 // pred_fallthru
      _
    %644 = vsyncpa [#allocation4], 1

</llo_original>
